<compile_context>
chip_gen: v5e
topology: v5e:2x2
jax: 0.10.0
libtpu: 0.0.40
codegen_flags: <defaults>
</compile_context>

<pallas_src>
import functools

import jax
import jax.numpy as jnp
from jax import lax
from jax.experimental import pallas as pl
from jax.experimental.pallas import tpu as pltpu


# ----------------------------------------------------------------------------
# Fused kernel: projections + prune + attention (all heads) + fc_out
# ----------------------------------------------------------------------------
def _fused_attention_kernel(*refs, heads, head_dim, embed_size, threshold,
                            has_mask, mask_heads, mxu_dtype, approx_recip):
    if has_mask:
        (mask_ref, q_ref, k_ref, v_ref,
         wq_ref, wk_ref, wv_ref, wo_ref, b_ref, out_ref, ctx_ref) = refs
    else:
        (q_ref, k_ref, v_ref,
         wq_ref, wk_ref, wv_ref, wo_ref, b_ref, out_ref, ctx_ref) = refs
        mask_ref = None

    inv_scale = 1.0 / (float(embed_size) ** 0.5)
    # masked positions become -1e20 * inv_scale, matching masked_fill(-1e20)
    # followed by the /sqrt(E) scale in the reference.
    neg_fill = jnp.float32(-1e20 * inv_scale)

    def project_and_prune(x_ref, w_ref):
        # One lane-dense (S, E) x (E, E) matmul against the block-diagonal
        # per-head weight; f32 accumulation; prune on the f32 result so the
        # threshold semantics do not depend on the streaming dtype.
        y = jnp.dot(x_ref[...], w_ref[...], preferred_element_type=jnp.float32)
        return jnp.where(jnp.abs(y) >= threshold, y, 0.0)

    # Fold the 1/sqrt(E) softmax scale into q after pruning (O(S*E) VPU work).
    qp = (project_and_prune(q_ref, wq_ref) * inv_scale).astype(mxu_dtype)
    kp = project_and_prune(k_ref, wk_ref).astype(mxu_dtype)
    vp = project_and_prune(v_ref, wv_ref).astype(mxu_dtype)

    if mask_ref is not None and mask_heads == 1:
        # Hoisted once out of the head loop: additive bias (0 or neg_fill).
        bias = jnp.where(mask_ref[0] != 0, 0.0, neg_fill)

    # Static head loop: heads is small; per-head temporaries die each
    # iteration because the context goes straight to VMEM scratch.
    for h in range(heads):
        sl = slice(h * head_dim, (h + 1) * head_dim)

        # energy[q, k] = q_h . k_h   (transposed-RHS matmul, no explicit .T)
        energy = lax.dot_general(qp[:, sl], kp[:, sl],
                                 (((1,), (1,)), ((), ())),
                                 preferred_element_type=jnp.float32)

        if mask_ref is not None:
            if mask_heads == 1:
                energy = energy + bias
            else:
                energy = jnp.where(mask_ref[h] != 0, energy, neg_fill)

        m = jnp.max(energy, axis=-1, keepdims=True)
        p = jnp.exp(energy - m)                       # unnormalized weights
        denom = jnp.sum(p, axis=-1, keepdims=True)

        # Deferred normalization: scale the (Sq, D) context, not the (Sq, Sk)
        # attention matrix.  EUP reciprocal rides a free VLIW slot.
        ctx_h = jnp.dot(p.astype(mxu_dtype), vp[:, sl],
                        preferred_element_type=jnp.float32)
        ctx_h = ctx_h * pl.reciprocal(denom, approx=approx_recip)
        ctx_ref[:, sl] = ctx_h.astype(ctx_ref.dtype)

    # Fused fc_out: one (Sq, E) x (E, E) matmul + bias, lane-dense output.
    out = jnp.dot(ctx_ref[...], wo_ref[...], preferred_element_type=jnp.float32)
    out_ref[...] = (out + b_ref[...]).astype(out_ref.dtype)


# ----------------------------------------------------------------------------
# Wrapper
# ----------------------------------------------------------------------------
def dynamic_pruning_self_attention(values, keys, queries, mask, params, *,
                                   heads, pruning_threshold,
                                   mxu_dtype=jnp.float32,
                                   block_q=None, approx_recip=True):
    """values/keys/queries: (N, seq, embed) in native layout.
    mask: None or PyTorch-style broadcastable to (N, heads, q_len, k_len)
    (head axis must be 1 or `heads`).  Returns (N, q_len, embed) float32."""
    mxu_dtype = jnp.dtype(mxu_dtype)

    N, v_len, embed_size = values.shape
    k_len = keys.shape[1]
    q_len = queries.shape[1]
    head_dim = embed_size // heads

    # Stream activations in the MXU dtype (bf16 halves DMA bytes and the
    # double-buffered input VMEM; prune still compares the f32 accumulator).
    queries = queries.astype(mxu_dtype)
    keys = keys.astype(mxu_dtype)
    values = values.astype(mxu_dtype)

    # Block-diagonal per-head projection weights: y_full = x_full @ kron(I, W.T)
    # reproduces per-head x_h @ W.T for every head in ONE lane-dense matmul.
    eye = jnp.eye(heads, dtype=jnp.float32)
    wq_blk = jnp.kron(eye, params["wq"].astype(jnp.float32).T).astype(mxu_dtype)
    wk_blk = jnp.kron(eye, params["wk"].astype(jnp.float32).T).astype(mxu_dtype)
    wv_blk = jnp.kron(eye, params["wv"].astype(jnp.float32).T).astype(mxu_dtype)
    wo_t = params["w_out"].astype(jnp.float32).T.astype(mxu_dtype)
    b2 = params["b_out"].reshape(1, embed_size).astype(jnp.float32)

    # q tiling: second "parallel" grid axis (keeps both v7x TCs busy at N == 1
    # and bounds per-step VMEM).  K/V are re-projected per q tile, cheap
    # relative to QK/AV once block_q >= embed_size.
    if block_q is None:
        block_q = q_len if q_len <= 512 else 512
    if q_len % block_q != 0 or (block_q != q_len and block_q % 32 != 0):
        block_q = q_len
    num_q_tiles = q_len // block_q

    has_mask = mask is not None
    mask_heads = 1
    call_args = []
    in_specs = []

    if has_mask:
        m = jnp.asarray(mask)
        m = m.reshape((1,) * (4 - m.ndim) + m.shape)       # left-pad to 4D
        if m.shape[1] == heads:
            mask_heads = heads
        elif m.shape[1] != 1:
            raise ValueError(
                f"mask head axis must be 1 or heads={heads}, got {m.shape[1]}")
        mask4 = jnp.broadcast_to(m != 0,
                                 (N, mask_heads, q_len, k_len)).astype(jnp.int8)
        call_args.append(mask4)
        in_specs.append(pl.BlockSpec((None, mask_heads, block_q, k_len),
                                     lambda n, t: (n, 0, t, 0)))

    # Weights / bias: whole-array VMEM residents -> single-buffered, constant
    # across the grid (vs. the default double-buffered pipeline copies).
    weight_spec = pl.BlockSpec(memory_space=pltpu.MemorySpace.VMEM)

    call_args += [queries, keys, values, wq_blk, wk_blk, wv_blk, wo_t, b2]
    in_specs += [
        pl.BlockSpec((None, block_q, embed_size), lambda n, t: (n, t, 0)),
        pl.BlockSpec((None, k_len, embed_size), lambda n, t: (n, 0, 0)),
        pl.BlockSpec((None, v_len, embed_size), lambda n, t: (n, 0, 0)),
        weight_spec, weight_spec, weight_spec, weight_spec, weight_spec,
    ]

    kernel = functools.partial(
        _fused_attention_kernel,
        heads=heads, head_dim=head_dim, embed_size=embed_size,
        threshold=float(pruning_threshold),
        has_mask=has_mask, mask_heads=mask_heads, mxu_dtype=mxu_dtype,
        approx_recip=approx_recip)

    # Explicit scoped-VMEM budget (v5e default 16 MiB is the usual limiter).
    item = mxu_dtype.itemsize
    vmem_bytes = (
        2 * block_q * embed_size * item                       # q (dbl-buffered)
        + 2 * (k_len + v_len) * embed_size * item             # k, v
        + (2 * mask_heads * block_q * k_len if has_mask else 0)
        + 4 * embed_size * embed_size * item                  # resident weights
        + embed_size * 4                                      # bias
        + 2 * block_q * embed_size * 4                        # out (f32)
        + block_q * embed_size * item                         # ctx scratch
        + 8 * block_q * k_len * 4)                            # energy/exp temps
    vmem_limit = int(min(max(2 * vmem_bytes, 32 * 1024 * 1024),
                         128 * 1024 * 1024))

    return pl.pallas_call(
        kernel,
        out_shape=jax.ShapeDtypeStruct((N, q_len, embed_size), jnp.float32),
        grid=(N, num_q_tiles),
        in_specs=in_specs,
        out_specs=pl.BlockSpec((None, block_q, embed_size),
                               lambda n, t: (n, t, 0)),
        scratch_shapes=[pltpu.VMEM((block_q, embed_size), mxu_dtype)],
        compiler_params=pltpu.CompilerParams(
            dimension_semantics=("parallel", "parallel"),
            vmem_limit_bytes=vmem_limit),
    )(*call_args)


# ----------------------------------------------------------------------------
# Pure-JAX reference (mirrors the PyTorch forward exactly)
# ----------------------------------------------------------------------------
def reference_forward(values, keys, queries, mask, params,
                      *, heads, pruning_threshold):
    N, v_len, embed_size = values.shape
    k_len, q_len = keys.shape[1], queries.shape[1]
    head_dim = embed_size // heads

    def prune(x):
        return x * (jnp.abs(x) >= pruning_threshold).astype(jnp.float32)

    v = values.reshape(N, v_len, heads, head_dim)
    k = keys.reshape(N, k_len, heads, head_dim)
    q = queries.reshape(N, q_len, heads, head_dim)

    q = prune(jnp.einsum("nqhd,ed->nqhe", q, params["wq"]))
    k = prune(jnp.einsum("nkhd,ed->nkhe", k, params["wk"]))
    v = prune(jnp.einsum("nvhd,ed->nvhe", v, params["wv"]))

    energy = jnp.einsum("nqhd,nkhd->nhqk", q, k)
    if mask is not None:
        energy = jnp.where(jnp.asarray(mask) == 0, -1e20, energy)
    attn = jax.nn.softmax(energy / jnp.sqrt(embed_size), axis=3)
    out = jnp.einsum("nhql,nlhd->nqhd", attn, v).reshape(N, q_len, embed_size)
    return out @ params["w_out"].T + params["b_out"]


# ----------------------------------------------------------------------------
if __name__ == "__main__":
    N = 2
    seq = 8
    embed_size = 32
    heads = 4
    head_dim = embed_size // heads
    pruning_threshold = 0.1

    key = jax.random.PRNGKey(0)
    kv, kk, kq, k1, k2, k3, k4, k5 = jax.random.split(key, 8)

    values = jax.random.normal(kv, (N, seq, embed_size), jnp.float32)
    keys_in = jax.random.normal(kk, (N, seq, embed_size), jnp.float32)
    queries = jax.random.normal(kq, (N, seq, embed_size), jnp.float32)

    params = {
        "wq": jax.random.normal(k1, (head_dim, head_dim), jnp.float32) * 0.2,
        "wk": jax.random.normal(k2, (head_dim, head_dim), jnp.float32) * 0.2,
        "wv": jax.random.normal(k3, (head_dim, head_dim), jnp.float32) * 0.2,
        "w_out": jax.random.normal(k4, (embed_size, embed_size), jnp.float32) * 0.1,
        "b_out": jax.random.normal(k5, (embed_size,), jnp.float32) * 0.1,
    }

    ref = reference_forward(values, keys_in, queries, None, params,
                            heads=heads, pruning_threshold=pruning_threshold)

    # f32-path tolerance: both kernel and reference matmuls run at DEFAULT MXU
    # precision and the kernel uses approx reciprocal + deferred softmax
    # normalization, so ~1e-3-level differences are expected.
    F32_TOL = dict(atol=5e-3, rtol=5e-3)

    # 1) mask=None, f32 MXU operands (nothing is streamed for the mask)
    out_f32 = dynamic_pruning_self_attention(
        values, keys_in, queries, None, params,
        heads=heads, pruning_threshold=pruning_threshold,
        mxu_dtype=jnp.float32)
    out_f32 = jax.block_until_ready(out_f32)
    assert out_f32.shape == (N, seq, embed_size)
    assert jnp.allclose(out_f32, ref, **F32_TOL), "f32 path mismatch"

    # 2) mask=None, bf16 streaming + bf16 MXU operands.  Loose tolerance:
    #    bf16 operand rounding can flip prune decisions for elements right at
    #    the |x| ~= threshold boundary.
    out_bf16 = dynamic_pruning_self_attention(
        values, keys_in, queries, None, params,
        heads=heads, pruning_threshold=pruning_threshold,
        mxu_dtype=jnp.bfloat16)
    out_bf16 = jax.block_until_ready(out_bf16)
    assert jnp.allclose(out_bf16, ref, atol=1e-1, rtol=1e-1), "bf16 path mismatch"

    # 3) causal mask shared across heads: int8 stream, additive-bias path
    causal = jnp.tril(jnp.ones((seq, seq), jnp.int32))[None, None]  # (1,1,S,S)
    out_m = dynamic_pruning_self_attention(
        values, keys_in, queries, causal, params,
        heads=heads, pruning_threshold=pruning_threshold,
        mxu_dtype=jnp.float32)
    out_m = jax.block_until_ready(out_m)
    ref_m = reference_forward(values, keys_in, queries, causal, params,
                              heads=heads, pruning_threshold=pruning_threshold)
    assert jnp.allclose(out_m, ref_m, **F32_TOL), "shared-mask path mismatch"

    # 4) per-head band mask (head axis == heads): per-head select path.
    idx = jnp.arange(seq)
    band = jnp.stack([(jnp.abs(idx[:, None] - idx[None, :]) <= h)
                      for h in range(1, heads + 1)])              # (H,S,S)
    per_head = jnp.broadcast_to(band[None], (N, heads, seq, seq)).astype(jnp.int32)
    out_ph = dynamic_pruning_self_attention(
        values, keys_in, queries, per_head, params,
        heads=heads, pruning_threshold=pruning_threshold,
        mxu_dtype=jnp.float32)
    out_ph = jax.block_until_ready(out_ph)
    ref_ph = reference_forward(values, keys_in, queries, per_head, params,
                               heads=heads, pruning_threshold=pruning_threshold)
    assert jnp.allclose(out_ph, ref_ph, **F32_TOL), "per-head mask path mismatch"

    print("KERNEL_OK")
</pallas_src>

<mosaic_0001>
module attributes {stable_mosaic.version = 11 : i64} {
  func.func @_fused_attention_kernel(%arg0: i32, %arg1: i32, %arg2: memref<1x8x32xf32, #tpu.memory_space<vmem>>, %arg3: memref<1x8x32xf32, #tpu.memory_space<vmem>>, %arg4: memref<1x8x32xf32, #tpu.memory_space<vmem>>, %arg5: memref<32x32xf32, #tpu.memory_space<vmem>>, %arg6: memref<32x32xf32, #tpu.memory_space<vmem>>, %arg7: memref<32x32xf32, #tpu.memory_space<vmem>>, %arg8: memref<32x32xf32, #tpu.memory_space<vmem>>, %arg9: memref<1x32xf32, #tpu.memory_space<vmem>>, %arg10: memref<1x8x32xf32, #tpu.memory_space<vmem>>, %arg11: memref<8x32xf32, #tpu.memory_space<vmem>>) attributes {dimension_semantics = [#tpu.dimension_semantics<parallel>, #tpu.dimension_semantics<parallel>], iteration_bounds = array<i64: 2, 1>, scalar_prefetch = 0 : i64, scratch_operands = 1 : i64, tpu.core_type = #tpu.core_type<tc>, window_params = [{transform_indices = @transform_0, window_bounds = array<i64: 1, 8, 32>}, {transform_indices = @transform_1, window_bounds = array<i64: 1, 8, 32>}, {transform_indices = @transform_2, window_bounds = array<i64: 1, 8, 32>}, {pipeline_mode = #tpu.pipeline_mode<synchronous>, transform_indices = @transform_3, window_bounds = array<i64: 32, 32>}, {pipeline_mode = #tpu.pipeline_mode<synchronous>, transform_indices = @transform_4, window_bounds = array<i64: 32, 32>}, {pipeline_mode = #tpu.pipeline_mode<synchronous>, transform_indices = @transform_5, window_bounds = array<i64: 32, 32>}, {pipeline_mode = #tpu.pipeline_mode<synchronous>, transform_indices = @transform_6, window_bounds = array<i64: 32, 32>}, {pipeline_mode = #tpu.pipeline_mode<synchronous>, transform_indices = @transform_7, window_bounds = array<i64: 1, 32>}, {transform_indices = @transform_8, window_bounds = array<i64: 1, 8, 32>}]} {
    %c0 = arith.constant 0 : index
    %c0_0 = arith.constant 0 : index
    %c0_1 = arith.constant 0 : index
    %0 = vector.load %arg2[%c0, %c0_0, %c0_1] : memref<1x8x32xf32, #tpu.memory_space<vmem>>, vector<1x8x32xf32>
    %1 = vector.shape_cast %0 : vector<1x8x32xf32> to vector<8x32xf32>
    %c0_2 = arith.constant 0 : index
    %c0_3 = arith.constant 0 : index
    %2 = vector.load %arg5[%c0_2, %c0_3] : memref<32x32xf32, #tpu.memory_space<vmem>>, vector<32x32xf32>
    %cst = arith.constant dense<0.000000e+00> : vector<8x32xf32>
    %3 = tpu.matmul %1, %2, %cst {dimension_numbers = #tpu.dot_dimension_numbers<[1], [0], [0], [1], [0, 0, 1, 1], [], []>} : vector<8x32xf32>, vector<32x32xf32>, vector<8x32xf32> -> vector<8x32xf32>
    %4 = math.absf %3 : vector<8x32xf32>
    %cst_4 = arith.constant 1.000000e-01 : f32
    %5 = vector.broadcast %cst_4 : f32 to vector<8x32xf32>
    %6 = arith.cmpf oge, %4, %5 : vector<8x32xf32>
    %cst_5 = arith.constant 0.000000e+00 : f32
    %7 = vector.broadcast %cst_5 : f32 to vector<8x32xf32>
    %8 = arith.select %6, %3, %7 : vector<8x32xi1>, vector<8x32xf32>
    %cst_6 = arith.constant 0.176776692 : f32
    %9 = vector.broadcast %cst_6 : f32 to vector<8x32xf32>
    %10 = arith.mulf %8, %9 : vector<8x32xf32>
    %c0_7 = arith.constant 0 : index
    %c0_8 = arith.constant 0 : index
    %c0_9 = arith.constant 0 : index
    %11 = vector.load %arg3[%c0_7, %c0_8, %c0_9] : memref<1x8x32xf32, #tpu.memory_space<vmem>>, vector<1x8x32xf32>
    %12 = vector.shape_cast %11 : vector<1x8x32xf32> to vector<8x32xf32>
    %c0_10 = arith.constant 0 : index
    %c0_11 = arith.constant 0 : index
    %13 = vector.load %arg6[%c0_10, %c0_11] : memref<32x32xf32, #tpu.memory_space<vmem>>, vector<32x32xf32>
    %cst_12 = arith.constant dense<0.000000e+00> : vector<8x32xf32>
    %14 = tpu.matmul %12, %13, %cst_12 {dimension_numbers = #tpu.dot_dimension_numbers<[1], [0], [0], [1], [0, 0, 1, 1], [], []>} : vector<8x32xf32>, vector<32x32xf32>, vector<8x32xf32> -> vector<8x32xf32>
    %15 = math.absf %14 : vector<8x32xf32>
    %cst_13 = arith.constant 1.000000e-01 : f32
    %16 = vector.broadcast %cst_13 : f32 to vector<8x32xf32>
    %17 = arith.cmpf oge, %15, %16 : vector<8x32xf32>
    %cst_14 = arith.constant 0.000000e+00 : f32
    %18 = vector.broadcast %cst_14 : f32 to vector<8x32xf32>
    %19 = arith.select %17, %14, %18 : vector<8x32xi1>, vector<8x32xf32>
    %c0_15 = arith.constant 0 : index
    %c0_16 = arith.constant 0 : index
    %c0_17 = arith.constant 0 : index
    %20 = vector.load %arg4[%c0_15, %c0_16, %c0_17] : memref<1x8x32xf32, #tpu.memory_space<vmem>>, vector<1x8x32xf32>
    %21 = vector.shape_cast %20 : vector<1x8x32xf32> to vector<8x32xf32>
    %c0_18 = arith.constant 0 : index
    %c0_19 = arith.constant 0 : index
    %22 = vector.load %arg7[%c0_18, %c0_19] : memref<32x32xf32, #tpu.memory_space<vmem>>, vector<32x32xf32>
    %cst_20 = arith.constant dense<0.000000e+00> : vector<8x32xf32>
    %23 = tpu.matmul %21, %22, %cst_20 {dimension_numbers = #tpu.dot_dimension_numbers<[1], [0], [0], [1], [0, 0, 1, 1], [], []>} : vector<8x32xf32>, vector<32x32xf32>, vector<8x32xf32> -> vector<8x32xf32>
    %24 = math.absf %23 : vector<8x32xf32>
    %cst_21 = arith.constant 1.000000e-01 : f32
    %25 = vector.broadcast %cst_21 : f32 to vector<8x32xf32>
    %26 = arith.cmpf oge, %24, %25 : vector<8x32xf32>
    %cst_22 = arith.constant 0.000000e+00 : f32
    %27 = vector.broadcast %cst_22 : f32 to vector<8x32xf32>
    %28 = arith.select %26, %23, %27 : vector<8x32xi1>, vector<8x32xf32>
    %29 = vector.extract_strided_slice %10 {offsets = [0, 0], sizes = [8, 8], strides = [1, 1]} : vector<8x32xf32> to vector<8x8xf32>
    %30 = vector.extract_strided_slice %19 {offsets = [0, 0], sizes = [8, 8], strides = [1, 1]} : vector<8x32xf32> to vector<8x8xf32>
    %cst_23 = arith.constant dense<0.000000e+00> : vector<8x8xf32>
    %31 = tpu.matmul %29, %30, %cst_23 {dimension_numbers = #tpu.dot_dimension_numbers<[1], [1], [0], [0], [0, 0, 1, 0], [], []>} : vector<8x8xf32>, vector<8x8xf32>, vector<8x8xf32> -> vector<8x8xf32>
    %cst_24 = arith.constant dense<0xFF800000> : vector<8xf32>
    %32 = vector.multi_reduction <maximumf>, %31, %cst_24 [1] : vector<8x8xf32> to vector<8xf32>
    %33 = vector.shape_cast %32 : vector<8xf32> to vector<8x1xf32>
    %34 = vector.broadcast %33 : vector<8x1xf32> to vector<8x8xf32>
    %35 = arith.subf %31, %34 : vector<8x8xf32>
    %36 = math.exp %35 : vector<8x8xf32>
    %cst_25 = arith.constant dense<0.000000e+00> : vector<8xf32>
    %37 = vector.multi_reduction <add>, %36, %cst_25 [1] : vector<8x8xf32> to vector<8xf32>
    %38 = vector.shape_cast %37 : vector<8xf32> to vector<8x1xf32>
    %39 = vector.extract_strided_slice %28 {offsets = [0, 0], sizes = [8, 8], strides = [1, 1]} : vector<8x32xf32> to vector<8x8xf32>
    %cst_26 = arith.constant dense<0.000000e+00> : vector<8x8xf32>
    %40 = tpu.matmul %36, %39, %cst_26 {dimension_numbers = #tpu.dot_dimension_numbers<[1], [0], [0], [1], [0, 0, 1, 1], [], []>} : vector<8x8xf32>, vector<8x8xf32>, vector<8x8xf32> -> vector<8x8xf32>
    %41 = tpu.reciprocal %38 {approx = true} : vector<8x1xf32> -> vector<8x1xf32>
    %42 = vector.broadcast %41 : vector<8x1xf32> to vector<8x8xf32>
    %43 = arith.mulf %40, %42 : vector<8x8xf32>
    %c0_27 = arith.constant 0 : index
    %c0_28 = arith.constant 0 : index
    %44 = vector.load %arg11[%c0_27, %c0_28] : memref<8x32xf32, #tpu.memory_space<vmem>>, vector<8x8xf32>
    tpu.vector_store %arg11[%c0_27, %c0_28], %43 {strides = array<i32>} : memref<8x32xf32, #tpu.memory_space<vmem>>, vector<8x8xf32>,
    %45 = vector.extract_strided_slice %10 {offsets = [0, 8], sizes = [8, 8], strides = [1, 1]} : vector<8x32xf32> to vector<8x8xf32>
    %46 = vector.extract_strided_slice %19 {offsets = [0, 8], sizes = [8, 8], strides = [1, 1]} : vector<8x32xf32> to vector<8x8xf32>
    %cst_29 = arith.constant dense<0.000000e+00> : vector<8x8xf32>
    %47 = tpu.matmul %45, %46, %cst_29 {dimension_numbers = #tpu.dot_dimension_numbers<[1], [1], [0], [0], [0, 0, 1, 0], [], []>} : vector<8x8xf32>, vector<8x8xf32>, vector<8x8xf32> -> vector<8x8xf32>
    %cst_30 = arith.constant dense<0xFF800000> : vector<8xf32>
    %48 = vector.multi_reduction <maximumf>, %47, %cst_30 [1] : vector<8x8xf32> to vector<8xf32>
    %49 = vector.shape_cast %48 : vector<8xf32> to vector<8x1xf32>
    %50 = vector.broadcast %49 : vector<8x1xf32> to vector<8x8xf32>
    %51 = arith.subf %47, %50 : vector<8x8xf32>
    %52 = math.exp %51 : vector<8x8xf32>
    %cst_31 = arith.constant dense<0.000000e+00> : vector<8xf32>
    %53 = vector.multi_reduction <add>, %52, %cst_31 [1] : vector<8x8xf32> to vector<8xf32>
    %54 = vector.shape_cast %53 : vector<8xf32> to vector<8x1xf32>
    %55 = vector.extract_strided_slice %28 {offsets = [0, 8], sizes = [8, 8], strides = [1, 1]} : vector<8x32xf32> to vector<8x8xf32>
    %cst_32 = arith.constant dense<0.000000e+00> : vector<8x8xf32>
    %56 = tpu.matmul %52, %55, %cst_32 {dimension_numbers = #tpu.dot_dimension_numbers<[1], [0], [0], [1], [0, 0, 1, 1], [], []>} : vector<8x8xf32>, vector<8x8xf32>, vector<8x8xf32> -> vector<8x8xf32>
    %57 = tpu.reciprocal %54 {approx = true} : vector<8x1xf32> -> vector<8x1xf32>
    %58 = vector.broadcast %57 : vector<8x1xf32> to vector<8x8xf32>
    %59 = arith.mulf %56, %58 : vector<8x8xf32>
    %c0_33 = arith.constant 0 : index
    %c8 = arith.constant 8 : index
    %60 = vector.load %arg11[%c0_33, %c8] : memref<8x32xf32, #tpu.memory_space<vmem>>, vector<8x8xf32>
    tpu.vector_store %arg11[%c0_33, %c8], %59 {strides = array<i32>} : memref<8x32xf32, #tpu.memory_space<vmem>>, vector<8x8xf32>,
    %61 = vector.extract_strided_slice %10 {offsets = [0, 16], sizes = [8, 8], strides = [1, 1]} : vector<8x32xf32> to vector<8x8xf32>
    %62 = vector.extract_strided_slice %19 {offsets = [0, 16], sizes = [8, 8], strides = [1, 1]} : vector<8x32xf32> to vector<8x8xf32>
    %cst_34 = arith.constant dense<0.000000e+00> : vector<8x8xf32>
    %63 = tpu.matmul %61, %62, %cst_34 {dimension_numbers = #tpu.dot_dimension_numbers<[1], [1], [0], [0], [0, 0, 1, 0], [], []>} : vector<8x8xf32>, vector<8x8xf32>, vector<8x8xf32> -> vector<8x8xf32>
    %cst_35 = arith.constant dense<0xFF800000> : vector<8xf32>
    %64 = vector.multi_reduction <maximumf>, %63, %cst_35 [1] : vector<8x8xf32> to vector<8xf32>
    %65 = vector.shape_cast %64 : vector<8xf32> to vector<8x1xf32>
    %66 = vector.broadcast %65 : vector<8x1xf32> to vector<8x8xf32>
    %67 = arith.subf %63, %66 : vector<8x8xf32>
    %68 = math.exp %67 : vector<8x8xf32>
    %cst_36 = arith.constant dense<0.000000e+00> : vector<8xf32>
    %69 = vector.multi_reduction <add>, %68, %cst_36 [1] : vector<8x8xf32> to vector<8xf32>
    %70 = vector.shape_cast %69 : vector<8xf32> to vector<8x1xf32>
    %71 = vector.extract_strided_slice %28 {offsets = [0, 16], sizes = [8, 8], strides = [1, 1]} : vector<8x32xf32> to vector<8x8xf32>
    %cst_37 = arith.constant dense<0.000000e+00> : vector<8x8xf32>
    %72 = tpu.matmul %68, %71, %cst_37 {dimension_numbers = #tpu.dot_dimension_numbers<[1], [0], [0], [1], [0, 0, 1, 1], [], []>} : vector<8x8xf32>, vector<8x8xf32>, vector<8x8xf32> -> vector<8x8xf32>
    %73 = tpu.reciprocal %70 {approx = true} : vector<8x1xf32> -> vector<8x1xf32>
    %74 = vector.broadcast %73 : vector<8x1xf32> to vector<8x8xf32>
    %75 = arith.mulf %72, %74 : vector<8x8xf32>
    %c0_38 = arith.constant 0 : index
    %c16 = arith.constant 16 : index
    %76 = vector.load %arg11[%c0_38, %c16] : memref<8x32xf32, #tpu.memory_space<vmem>>, vector<8x8xf32>
    tpu.vector_store %arg11[%c0_38, %c16], %75 {strides = array<i32>} : memref<8x32xf32, #tpu.memory_space<vmem>>, vector<8x8xf32>,
    %77 = vector.extract_strided_slice %10 {offsets = [0, 24], sizes = [8, 8], strides = [1, 1]} : vector<8x32xf32> to vector<8x8xf32>
    %78 = vector.extract_strided_slice %19 {offsets = [0, 24], sizes = [8, 8], strides = [1, 1]} : vector<8x32xf32> to vector<8x8xf32>
    %cst_39 = arith.constant dense<0.000000e+00> : vector<8x8xf32>
    %79 = tpu.matmul %77, %78, %cst_39 {dimension_numbers = #tpu.dot_dimension_numbers<[1], [1], [0], [0], [0, 0, 1, 0], [], []>} : vector<8x8xf32>, vector<8x8xf32>, vector<8x8xf32> -> vector<8x8xf32>
    %cst_40 = arith.constant dense<0xFF800000> : vector<8xf32>
    %80 = vector.multi_reduction <maximumf>, %79, %cst_40 [1] : vector<8x8xf32> to vector<8xf32>
    %81 = vector.shape_cast %80 : vector<8xf32> to vector<8x1xf32>
    %82 = vector.broadcast %81 : vector<8x1xf32> to vector<8x8xf32>
    %83 = arith.subf %79, %82 : vector<8x8xf32>
    %84 = math.exp %83 : vector<8x8xf32>
    %cst_41 = arith.constant dense<0.000000e+00> : vector<8xf32>
    %85 = vector.multi_reduction <add>, %84, %cst_41 [1] : vector<8x8xf32> to vector<8xf32>
    %86 = vector.shape_cast %85 : vector<8xf32> to vector<8x1xf32>
    %87 = vector.extract_strided_slice %28 {offsets = [0, 24], sizes = [8, 8], strides = [1, 1]} : vector<8x32xf32> to vector<8x8xf32>
    %cst_42 = arith.constant dense<0.000000e+00> : vector<8x8xf32>
    %88 = tpu.matmul %84, %87, %cst_42 {dimension_numbers = #tpu.dot_dimension_numbers<[1], [0], [0], [1], [0, 0, 1, 1], [], []>} : vector<8x8xf32>, vector<8x8xf32>, vector<8x8xf32> -> vector<8x8xf32>
    %89 = tpu.reciprocal %86 {approx = true} : vector<8x1xf32> -> vector<8x1xf32>
    %90 = vector.broadcast %89 : vector<8x1xf32> to vector<8x8xf32>
    %91 = arith.mulf %88, %90 : vector<8x8xf32>
    %c0_43 = arith.constant 0 : index
    %c24 = arith.constant 24 : index
    %92 = vector.load %arg11[%c0_43, %c24] : memref<8x32xf32, #tpu.memory_space<vmem>>, vector<8x8xf32>
    tpu.vector_store %arg11[%c0_43, %c24], %91 {strides = array<i32>} : memref<8x32xf32, #tpu.memory_space<vmem>>, vector<8x8xf32>,
    %c0_44 = arith.constant 0 : index
    %c0_45 = arith.constant 0 : index
    %93 = vector.load %arg11[%c0_44, %c0_45] : memref<8x32xf32, #tpu.memory_space<vmem>>, vector<8x32xf32>
    %c0_46 = arith.constant 0 : index
    %c0_47 = arith.constant 0 : index
    %94 = vector.load %arg8[%c0_46, %c0_47] : memref<32x32xf32, #tpu.memory_space<vmem>>, vector<32x32xf32>
    %cst_48 = arith.constant dense<0.000000e+00> : vector<8x32xf32>
    %95 = tpu.matmul %93, %94, %cst_48 {dimension_numbers = #tpu.dot_dimension_numbers<[1], [0], [0], [1], [0, 0, 1, 1], [], []>} : vector<8x32xf32>, vector<32x32xf32>, vector<8x32xf32> -> vector<8x32xf32>
    %c0_49 = arith.constant 0 : index
    %c0_50 = arith.constant 0 : index
    %96 = vector.load %arg9[%c0_49, %c0_50] : memref<1x32xf32, #tpu.memory_space<vmem>>, vector<1x32xf32>
    %97 = vector.broadcast %96 : vector<1x32xf32> to vector<8x32xf32>
    %98 = arith.addf %95, %97 : vector<8x32xf32>
    %c0_51 = arith.constant 0 : index
    %c0_52 = arith.constant 0 : index
    %c0_53 = arith.constant 0 : index
    %99 = vector.load %arg10[%c0_51, %c0_52, %c0_53] : memref<1x8x32xf32, #tpu.memory_space<vmem>>, vector<1x8x32xf32>
    %100 = vector.shape_cast %99 : vector<1x8x32xf32> to vector<8x32xf32>
    %101 = vector.shape_cast %98 : vector<8x32xf32> to vector<1x8x32xf32>
    tpu.vector_store %arg10[%c0_51, %c0_52, %c0_53], %101 {strides = array<i32>} : memref<1x8x32xf32, #tpu.memory_space<vmem>>, vector<1x8x32xf32>,
    return
  }
  func.func @transform_0(%arg0: i32, %arg1: i32) -> (i32, i32, i32) {
    %c0_i32 = arith.constant 0 : i32
    %c0_i32_0 = arith.constant 0 : i32
    return %arg0, %arg1, %c0_i32 : i32, i32, i32
  }
  func.func @transform_1(%arg0: i32, %arg1: i32) -> (i32, i32, i32) {
    %c0_i32 = arith.constant 0 : i32
    %c0_i32_0 = arith.constant 0 : i32
    %c0_i32_1 = arith.constant 0 : i32
    return %arg0, %c0_i32, %c0_i32_0 : i32, i32, i32
  }
  func.func @transform_2(%arg0: i32, %arg1: i32) -> (i32, i32, i32) {
    %c0_i32 = arith.constant 0 : i32
    %c0_i32_0 = arith.constant 0 : i32
    %c0_i32_1 = arith.constant 0 : i32
    return %arg0, %c0_i32, %c0_i32_0 : i32, i32, i32
  }
  func.func @transform_3(%arg0: i32, %arg1: i32) -> (i32, i32) {
    %c0_i32 = arith.constant 0 : i32
    %c0_i32_0 = arith.constant 0 : i32
    %c0_i32_1 = arith.constant 0 : i32
    return %c0_i32, %c0_i32_0 : i32, i32
  }
  func.func @transform_4(%arg0: i32, %arg1: i32) -> (i32, i32) {
    %c0_i32 = arith.constant 0 : i32
    %c0_i32_0 = arith.constant 0 : i32
    %c0_i32_1 = arith.constant 0 : i32
    return %c0_i32, %c0_i32_0 : i32, i32
  }
  func.func @transform_5(%arg0: i32, %arg1: i32) -> (i32, i32) {
    %c0_i32 = arith.constant 0 : i32
    %c0_i32_0 = arith.constant 0 : i32
    %c0_i32_1 = arith.constant 0 : i32
    return %c0_i32, %c0_i32_0 : i32, i32
  }
  func.func @transform_6(%arg0: i32, %arg1: i32) -> (i32, i32) {
    %c0_i32 = arith.constant 0 : i32
    %c0_i32_0 = arith.constant 0 : i32
    %c0_i32_1 = arith.constant 0 : i32
    return %c0_i32, %c0_i32_0 : i32, i32
  }
  func.func @transform_7(%arg0: i32, %arg1: i32) -> (i32, i32) {
    %c0_i32 = arith.constant 0 : i32
    %c0_i32_0 = arith.constant 0 : i32
    %c0_i32_1 = arith.constant 0 : i32
    return %c0_i32, %c0_i32_0 : i32, i32
  }
  func.func @transform_8(%arg0: i32, %arg1: i32) -> (i32, i32, i32) {
    %c0_i32 = arith.constant 0 : i32
    %c0_i32_0 = arith.constant 0 : i32
    return %arg0, %arg1, %c0_i32 : i32, i32, i32
  }
}

</mosaic_0001>

<llo_original>
// kernel: tpu_custom_call.1
$region0: #{tpu_custom_call.1}
  #allocation0 [shape = 'u32[]', space=smem, size = 0x4, offset = 0x4, fixed_abs, tag = 'smem constant byte address 0x4 - core index']
  #allocation1 [shape = 'u32[72,128]{1,0:T(1,128)}', space=vmem, size = 0x9000, scoped, tag = 'internal scratch']
  #allocation2 [shape = 'f32[8,32]{1,0:T(8,128)}', space=vmem, size = 0x1000, scoped, tag = 'scratch operand']
  %s0 = inlined_call_operand.hbm [shape: f32[2,8,32], index: 0, kind: input, shape index: {}]
  %s1 = inlined_call_operand.hbm [shape: f32[2,8,32], index: 1, kind: input, shape index: {}]
  %s2 = inlined_call_operand.hbm [shape: f32[2,8,32], index: 2, kind: input, shape index: {}]
  %s3 = inlined_call_operand.hbm [shape: f32[32,32], index: 3, kind: input, shape index: {}]
  %s4 = inlined_call_operand.hbm [shape: f32[32,32], index: 4, kind: input, shape index: {}]
  %s5 = inlined_call_operand.hbm [shape: f32[32,32], index: 5, kind: input, shape index: {}]
  %s6 = inlined_call_operand.hbm [shape: f32[32,32], index: 6, kind: input, shape index: {}]
  %s7 = inlined_call_operand.vmem [shape: f32[1,32], index: 7, kind: input, shape index: {}]
  %s8 = inlined_call_operand.hbm [shape: f32[2,8,32], index: 8, kind: output, shape index: {}]
  %s9 = sld [smem:[#allocation0]]
  $region93: #{tpu_custom_call.1} parent=0
    _
  %s11 = ssub.s32 1, %s9
  %s12 = scalar_select 0, %s11, %s9
  $region1: #{tpu_custom_call.1} parent=0
    #allocation3 [shape = 'u8[8192]{0}', space=vmem, size = 0x2000, scoped, tag = 'input window, operand 0']
    #allocation4 [shape = 's32[2]{0}', space=sflag, size = 0x8, scoped, tag = 'scoped memory for tpu_custom_call.1']
    #allocation5 [shape = 's32[2]{0}', space=sflag, size = 0x8, scoped, tag = 'scoped memory for tpu_custom_call.1']
    #allocation6 [shape = 'u8[8192]{0}', space=vmem, size = 0x2000, scoped, tag = 'input window, operand 1']
    #allocation7 [shape = 's32[2]{0}', space=sflag, size = 0x8, scoped, tag = 'scoped memory for tpu_custom_call.1']
    #allocation8 [shape = 'u8[8192]{0}', space=vmem, size = 0x2000, scoped, tag = 'input window, operand 2']
    #allocation9 [shape = 'u8[16384]{0}', space=vmem, size = 0x4000, scoped, tag = 'input window, operand 3, single buffered']
    #allocation10 [shape = 's32[1]{0}', space=sflag, size = 0x4, scoped, tag = 'scoped memory for tpu_custom_call.1']
    #allocation11 [shape = 'u8[16384]{0}', space=vmem, size = 0x4000, scoped, tag = 'input window, operand 4, single buffered']
    #allocation12 [shape = 'u8[16384]{0}', space=vmem, size = 0x4000, scoped, tag = 'input window, operand 5, single buffered']
    #allocation13 [shape = 's32[1]{0}', space=sflag, size = 0x4, scoped, tag = 'scoped memory for tpu_custom_call.1']
    #allocation14 [shape = 'u8[16384]{0}', space=vmem, size = 0x4000, scoped, tag = 'input window, operand 6, single buffered']
    #allocation15 [shape = 'u8[8192]{0}', space=vmem, size = 0x2000, scoped, tag = 'output window, operand 0']
    %13 = vsyncpa [#allocation4], 0
    %s14 = scalar_lea.sflag [#allocation4], 1
    %15 = vsyncpa %s14, 0
    %16 = vsyncpa [#allocation7], 0
    %s17 = scalar_lea.sflag [#allocation7], 1
    %18 = vsyncpa %s17, 0
    %19 = vsyncpa [#allocation10], 0
    %20 = vsyncpa [#allocation13], 0
    %21 = vsyncpa [#allocation5], 0
    %s22 = scalar_lea.sflag [#allocation5], 1
    %23 = vsyncpa %s22, 0
    loop: start=0, step=1, limit=4
    $region2: #{tpu_custom_call.1} parent=1 // loop_pre_header
      _
    $region3: #{tpu_custom_call.1} parent=1 // loop_header
      %s25 = sphi 0, %s29
      %p26 = scmp.ge.s32.totalorder %s25, 4
      %s32 = sphi 0, %s44
      %s33 = sphi 0, %s40
      %s34 = sphi 0, %s32
      %s35 = sphi 0, %s33
      %s36 = sphi 0, %s34
      %s37 = sphi 0, %s35
      %s49 = sphi 0, %s51
      %s52 = sphi 0, %s49
      %s53 = sphi 0, %s52
      %s69 = sphi 0, %s53
      %s75 = sphi 0, %s77
      %s78 = sphi 0, %s75
      %s79 = sphi 0, %s78
      %s95 = sphi 0, %s79
      %s101 = sphi 0, %s103
      %s104 = sphi 0, %s101
      %s105 = sphi 0, %s104
      %s121 = sphi 0, %s105
      %s125 = sphi 0, %s125
      %s127 = sphi 0, %s125
      %s128 = sphi 0, %s127
      %s142 = sphi 0, %s128
      %s146 = sphi 0, %s146
      %s148 = sphi 0, %s146
      %s149 = sphi 0, %s148
      %s163 = sphi 0, %s149
      %s167 = sphi 0, %s167
      %s169 = sphi 0, %s167
      %s170 = sphi 0, %s169
      %s184 = sphi 0, %s170
      %s188 = sphi 0, %s188
      %s190 = sphi 0, %s188
      %s191 = sphi 0, %s190
      %s205 = sphi 0, %s191
      %s209 = sphi 0, %s209
      %s211 = sphi 0, %s209
      %s212 = sphi 0, %s211
      %s226 = sphi 0, %s212
      %s234 = sphi 0, %s236
      %s237 = sphi 0, %s234
      %s238 = sphi 0, %s237
      %s254 = sphi 0, %s238
    $region4: #{tpu_custom_call.1} parent=1 // loop_header_branch
      %28 = sbr.rel (%p26) target = $region8
    $region5: #{tpu_custom_call.1} parent=1 // loop_body
      %s30 = ssub.s32 %s25, 1
      %s31 = ssub.s32 %s25, 2
      %s38 = sadd.s32 1, %s33
      %p39 = scmp.ge.s32.totalorder %s38, 1
      %s40 = scalar_select %p39, 0, %s38
      %s41 = sadd.s32 1, %s32
      %s42 = scalar_select %p39, %s41, %s32
      %p43 = scmp.ge.s32.totalorder %s42, 2
      %s44 = scalar_select %p43, 0, %s42
      %s45 = ssub.s32 %s32, %s44
      %s46 = ssub.s32 %s33, %s40
      %s47 = sor.u32 %s45, %s46
      %p48 = scmp.eq.s32.totalorder %s47, 0
      %s50 = sadd.s32 %s49, 1
      %s51 = scalar_select %p48, %s49, %s50
      %p54 = pneg %p48
      %p55 = scmp.eq.s32.totalorder %s25, 1
      %p56 = por %p54, %p55
      %p57 = scmp.ne.s32.totalorder %s49, %s52
      %p58 = scmp.eq.s32.totalorder %s25, 0
      %p59 = por %p57, %p58
      %p60 = scmp.ne.s32.totalorder %s49, %s52
      %p61 = scmp.eq.s32.totalorder %s30, 1
      %p62 = por %p60, %p61
      %p63 = scmp.ne.s32.totalorder %s52, %s53
      %p64 = scmp.eq.s32.totalorder %s30, 0
      %p65 = por %p63, %p64
      %p66 = scmp.ne.s32.totalorder %s52, %s53
      %p67 = scmp.eq.s32.totalorder %s31, 1
      %p68 = por %p66, %p67
      %p70 = scmp.ne.s32.totalorder %s53, %s69
      %p71 = scmp.eq.s32.totalorder %s31, 0
      %p72 = por %p70, %p71
      %s73 = ssub.s32 %s32, %s44
      %p74 = scmp.eq.s32.totalorder %s73, 0
      %s76 = sadd.s32 %s75, 1
      %s77 = scalar_select %p74, %s75, %s76
      %p80 = pneg %p74
      %p81 = scmp.eq.s32.totalorder %s25, 1
      %p82 = por %p80, %p81
      %p83 = scmp.ne.s32.totalorder %s75, %s78
      %p84 = scmp.eq.s32.totalorder %s25, 0
      %p85 = por %p83, %p84
      %p86 = scmp.ne.s32.totalorder %s75, %s78
      %p87 = scmp.eq.s32.totalorder %s30, 1
      %p88 = por %p86, %p87
      %p89 = scmp.ne.s32.totalorder %s78, %s79
      %p90 = scmp.eq.s32.totalorder %s30, 0
      %p91 = por %p89, %p90
      %p92 = scmp.ne.s32.totalorder %s78, %s79
      %p93 = scmp.eq.s32.totalorder %s31, 1
      %p94 = por %p92, %p93
      %p96 = scmp.ne.s32.totalorder %s79, %s95
      %p97 = scmp.eq.s32.totalorder %s31, 0
      %p98 = por %p96, %p97
      %s99 = ssub.s32 %s32, %s44
      %p100 = scmp.eq.s32.totalorder %s99, 0
      %s102 = sadd.s32 %s101, 1
      %s103 = scalar_select %p100, %s101, %s102
      %p106 = pneg %p100
      %p107 = scmp.eq.s32.totalorder %s25, 1
      %p108 = por %p106, %p107
      %p109 = scmp.ne.s32.totalorder %s101, %s104
      %p110 = scmp.eq.s32.totalorder %s25, 0
      %p111 = por %p109, %p110
      %p112 = scmp.ne.s32.totalorder %s101, %s104
      %p113 = scmp.eq.s32.totalorder %s30, 1
      %p114 = por %p112, %p113
      %p115 = scmp.ne.s32.totalorder %s104, %s105
      %p116 = scmp.eq.s32.totalorder %s30, 0
      %p117 = por %p115, %p116
      %p118 = scmp.ne.s32.totalorder %s104, %s105
      %p119 = scmp.eq.s32.totalorder %s31, 1
      %p120 = por %p118, %p119
      %p122 = scmp.ne.s32.totalorder %s105, %s121
      %p123 = scmp.eq.s32.totalorder %s31, 0
      %p124 = por %p122, %p123
      %s126 = sadd.s32 %s125, 1
      %p129 = scmp.eq.s32.totalorder %s25, 1
      %p130 = scmp.ne.s32.totalorder %s125, %s127
      %p131 = scmp.eq.s32.totalorder %s25, 0
      %p132 = por %p130, %p131
      %p133 = scmp.ne.s32.totalorder %s125, %s127
      %p134 = scmp.eq.s32.totalorder %s30, 1
      %p135 = por %p133, %p134
      %p136 = scmp.ne.s32.totalorder %s127, %s128
      %p137 = scmp.eq.s32.totalorder %s30, 0
      %p138 = por %p136, %p137
      %p139 = scmp.ne.s32.totalorder %s127, %s128
      %p140 = scmp.eq.s32.totalorder %s31, 1
      %p141 = por %p139, %p140
      %p143 = scmp.ne.s32.totalorder %s128, %s142
      %p144 = scmp.eq.s32.totalorder %s31, 0
      %p145 = por %p143, %p144
      %s147 = sadd.s32 %s146, 1
      %p150 = scmp.eq.s32.totalorder %s25, 1
      %p151 = scmp.ne.s32.totalorder %s146, %s148
      %p152 = scmp.eq.s32.totalorder %s25, 0
      %p153 = por %p151, %p152
      %p154 = scmp.ne.s32.totalorder %s146, %s148
      %p155 = scmp.eq.s32.totalorder %s30, 1
      %p156 = por %p154, %p155
      %p157 = scmp.ne.s32.totalorder %s148, %s149
      %p158 = scmp.eq.s32.totalorder %s30, 0
      %p159 = por %p157, %p158
      %p160 = scmp.ne.s32.totalorder %s148, %s149
      %p161 = scmp.eq.s32.totalorder %s31, 1
      %p162 = por %p160, %p161
      %p164 = scmp.ne.s32.totalorder %s149, %s163
      %p165 = scmp.eq.s32.totalorder %s31, 0
      %p166 = por %p164, %p165
      %s168 = sadd.s32 %s167, 1
      %p171 = scmp.eq.s32.totalorder %s25, 1
      %p172 = scmp.ne.s32.totalorder %s167, %s169
      %p173 = scmp.eq.s32.totalorder %s25, 0
      %p174 = por %p172, %p173
      %p175 = scmp.ne.s32.totalorder %s167, %s169
      %p176 = scmp.eq.s32.totalorder %s30, 1
      %p177 = por %p175, %p176
      %p178 = scmp.ne.s32.totalorder %s169, %s170
      %p179 = scmp.eq.s32.totalorder %s30, 0
      %p180 = por %p178, %p179
      %p181 = scmp.ne.s32.totalorder %s169, %s170
      %p182 = scmp.eq.s32.totalorder %s31, 1
      %p183 = por %p181, %p182
      %p185 = scmp.ne.s32.totalorder %s170, %s184
      %p186 = scmp.eq.s32.totalorder %s31, 0
      %p187 = por %p185, %p186
      %s189 = sadd.s32 %s188, 1
      %p192 = scmp.eq.s32.totalorder %s25, 1
      %p193 = scmp.ne.s32.totalorder %s188, %s190
      %p194 = scmp.eq.s32.totalorder %s25, 0
      %p195 = por %p193, %p194
      %p196 = scmp.ne.s32.totalorder %s188, %s190
      %p197 = scmp.eq.s32.totalorder %s30, 1
      %p198 = por %p196, %p197
      %p199 = scmp.ne.s32.totalorder %s190, %s191
      %p200 = scmp.eq.s32.totalorder %s30, 0
      %p201 = por %p199, %p200
      %p202 = scmp.ne.s32.totalorder %s190, %s191
      %p203 = scmp.eq.s32.totalorder %s31, 1
      %p204 = por %p202, %p203
      %p206 = scmp.ne.s32.totalorder %s191, %s205
      %p207 = scmp.eq.s32.totalorder %s31, 0
      %p208 = por %p206, %p207
      %s210 = sadd.s32 %s209, 1
      %p213 = scmp.eq.s32.totalorder %s25, 1
      %p214 = scmp.ne.s32.totalorder %s209, %s211
      %p215 = scmp.eq.s32.totalorder %s25, 0
      %p216 = por %p214, %p215
      %p217 = scmp.ne.s32.totalorder %s209, %s211
      %p218 = scmp.eq.s32.totalorder %s30, 1
      %p219 = por %p217, %p218
      %p220 = scmp.ne.s32.totalorder %s211, %s212
      %p221 = scmp.eq.s32.totalorder %s30, 0
      %p222 = por %p220, %p221
      %p223 = scmp.ne.s32.totalorder %s211, %s212
      %p224 = scmp.eq.s32.totalorder %s31, 1
      %p225 = por %p223, %p224
      %p227 = scmp.ne.s32.totalorder %s212, %s226
      %p228 = scmp.eq.s32.totalorder %s31, 0
      %p229 = por %p227, %p228
      %s230 = ssub.s32 %s32, %s44
      %s231 = ssub.s32 %s33, %s40
      %s232 = sor.u32 %s230, %s231
      %p233 = scmp.eq.s32.totalorder %s232, 0
      %s235 = sadd.s32 %s234, 1
      %s236 = scalar_select %p233, %s234, %s235
      %p239 = pneg %p233
      %p240 = scmp.eq.s32.totalorder %s25, 1
      %p241 = por %p239, %p240
      %p242 = scmp.ne.s32.totalorder %s234, %s237
      %p243 = scmp.eq.s32.totalorder %s25, 0
      %p244 = por %p242, %p243
      %p245 = scmp.ne.s32.totalorder %s234, %s237
      %p246 = scmp.eq.s32.totalorder %s30, 1
      %p247 = por %p245, %p246
      %p248 = scmp.ne.s32.totalorder %s237, %s238
      %p249 = scmp.eq.s32.totalorder %s30, 0
      %p250 = por %p248, %p249
      %p251 = scmp.ne.s32.totalorder %s237, %s238
      %p252 = scmp.eq.s32.totalorder %s31, 1
      %p253 = por %p251, %p252
      %p255 = scmp.ne.s32.totalorder %s238, %s254
      %p256 = scmp.eq.s32.totalorder %s31, 0
      %p257 = por %p255, %p256
      %p258 = scmp.le.s32.totalorder 1, %s25
      %p259 = scmp.lt.s32.totalorder %s25, 3
      %p260 = pnand %p258, %p259
      %p261 = pneg %p260
      // Predicated region
      $region9: #{tpu_custom_call.1} parent=5 // pred_check
        _
      $region10: #{tpu_custom_call.1} parent=5 // pred_check_branch
        %263 = sbr.rel (%p260) target = $region12
      $region11: #{tpu_custom_call.1} parent=5 // pred_region
        %s264 = ssub.s32 %s25, 1
        // Predicated region
        $region13: #{tpu_custom_call.1} parent=11 // pred_check
          %p265 = pneg %p138
        $region14: #{tpu_custom_call.1} parent=11 // pred_check_branch
          %267 = sbr.rel (%p265) target = $region16
        $region15: #{tpu_custom_call.1} parent=11 // pred_region
          %269 = vsyncadd [#allocation10], 0
          %s270 = sshll.u32 %s3, 4
          %s271 = int_to_ptr.hbm [resolvable:$true] %s270
          %s272 = sshll.u32 [#allocation9], 4
          %s273 = int_to_ptr.vmem [resolvable:$true] %s272
          %278 = dma.hbm_to_vmem [thread:$0]  %s271, 512, %s273, [#allocation10], 128, 128, 8
        $region16: #{tpu_custom_call.1} parent=11 // pred_fallthru
          _
        // Predicated region
        $region17: #{tpu_custom_call.1} parent=11 // pred_check
          %p279 = pneg %p159
        $region18: #{tpu_custom_call.1} parent=11 // pred_check_branch
          %281 = sbr.rel (%p279) target = $region20
        $region19: #{tpu_custom_call.1} parent=11 // pred_region
          %283 = vsyncadd [#allocation10], 0
          %s284 = sshll.u32 %s4, 4
          %s285 = int_to_ptr.hbm [resolvable:$true] %s284
          %s286 = sshll.u32 [#allocation11], 4
          %s287 = int_to_ptr.vmem [resolvable:$true] %s286
          %292 = dma.hbm_to_vmem [thread:$0]  %s285, 512, %s287, [#allocation10], 128, 128, 8
        $region20: #{tpu_custom_call.1} parent=11 // pred_fallthru
          _
        // Predicated region
        $region21: #{tpu_custom_call.1} parent=11 // pred_check
          %p293 = pneg %p180
        $region22: #{tpu_custom_call.1} parent=11 // pred_check_branch
          %295 = sbr.rel (%p293) target = $region24
        $region23: #{tpu_custom_call.1} parent=11 // pred_region
          %297 = vsyncadd [#allocation13], 0
          %s298 = sshll.u32 %s5, 4
          %s299 = int_to_ptr.hbm [resolvable:$true] %s298
          %s300 = sshll.u32 [#allocation12], 4
          %s301 = int_to_ptr.vmem [resolvable:$true] %s300
          %306 = dma.hbm_to_vmem [thread:$0]  %s299, 512, %s301, [#allocation13], 128, 128, 8
        $region24: #{tpu_custom_call.1} parent=11 // pred_fallthru
          _
        // Predicated region
        $region25: #{tpu_custom_call.1} parent=11 // pred_check
          %p307 = pneg %p201
        $region26: #{tpu_custom_call.1} parent=11 // pred_check_branch
          %309 = sbr.rel (%p307) target = $region28
        $region27: #{tpu_custom_call.1} parent=11 // pred_region
          %311 = vsyncadd [#allocation13], 0
          %s312 = sshll.u32 %s6, 4
          %s313 = int_to_ptr.hbm [resolvable:$true] %s312
          %s314 = sshll.u32 [#allocation14], 4
          %s315 = int_to_ptr.vmem [resolvable:$true] %s314
          %320 = dma.hbm_to_vmem [thread:$0]  %s313, 512, %s315, [#allocation13], 128, 128, 8
        $region28: #{tpu_custom_call.1} parent=11 // pred_fallthru
          _
        // Predicated region
        $region29: #{tpu_custom_call.1} parent=11 // pred_check
          %p321 = pneg %p222
        $region30: #{tpu_custom_call.1} parent=11 // pred_check_branch
          %323 = sbr.rel (%p321) target = $region32
        $region31: #{tpu_custom_call.1} parent=11 // pred_region
          _
        $region32: #{tpu_custom_call.1} parent=11 // pred_fallthru
          _
      $region12: #{tpu_custom_call.1} parent=5 // pred_fallthru
        _
      %p324 = scmp.lt.s32.totalorder %s25, 2
      // Predicated region
      $region33: #{tpu_custom_call.1} parent=5 // pred_check
        %p325 = pneg %p324
      $region34: #{tpu_custom_call.1} parent=5 // pred_check_branch
        %327 = sbr.rel (%p325) target = $region36
      $region35: #{tpu_custom_call.1} parent=5 // pred_region
        // Predicated region
        $region37: #{tpu_custom_call.1} parent=35 // pred_check
          %p328 = pneg %p59
        $region38: #{tpu_custom_call.1} parent=35 // pred_check_branch
          %330 = sbr.rel (%p328) target = $region40
        $region39: #{tpu_custom_call.1} parent=35 // pred_region
          %s331 = sand.u32 %s49, 1
          %s332 = scalar_lea.sflag [#allocation4], %s331
          %s333 = sand.u32 %s49, 1
          %s334 = smul.addr %s333, 8
          %s335 = scalar_lea.vmem [#allocation3], %s334
          %337 = vsyncadd %s332, 0
          %s338 = sadd.s32 %s33, %s32
          %s339 = smul.addr %s338, 8
          %s340 = scalar_lea.hbm %s0, %s339
          %s342 = sshll.u32 %s340, 4
          %s343 = int_to_ptr.hbm [resolvable:$true] %s342
          %s344 = sshll.u32 %s335, 4
          %s345 = int_to_ptr.vmem [resolvable:$true] %s344
          %347 = dma.hbm_to_vmem [thread:$0]  %s343, 128, %s345, %s332
        $region40: #{tpu_custom_call.1} parent=35 // pred_fallthru
          _
        // Predicated region
        $region41: #{tpu_custom_call.1} parent=35 // pred_check
          %p348 = pneg %p85
        $region42: #{tpu_custom_call.1} parent=35 // pred_check_branch
          %350 = sbr.rel (%p348) target = $region44
        $region43: #{tpu_custom_call.1} parent=35 // pred_region
          %s351 = sand.u32 %s25, 1
          %s352 = scalar_lea.sflag [#allocation7], %s351
          %s353 = sand.u32 %s75, 1
          %s354 = smul.addr %s353, 8
          %s355 = scalar_lea.vmem [#allocation6], %s354
          %357 = vsyncadd %s352, 0
          %s358 = smul.addr %s32, 8
          %s359 = scalar_lea.hbm %s1, %s358
          %s361 = sshll.u32 %s359, 4
          %s362 = int_to_ptr.hbm [resolvable:$true] %s361
          %s363 = sshll.u32 %s355, 4
          %s364 = int_to_ptr.vmem [resolvable:$true] %s363
          %366 = dma.hbm_to_vmem [thread:$0]  %s362, 128, %s364, %s352
        $region44: #{tpu_custom_call.1} parent=35 // pred_fallthru
          _
        // Predicated region
        $region45: #{tpu_custom_call.1} parent=35 // pred_check
          %p367 = pneg %p111
        $region46: #{tpu_custom_call.1} parent=35 // pred_check_branch
          %369 = sbr.rel (%p367) target = $region48
        $region47: #{tpu_custom_call.1} parent=35 // pred_region
          %s370 = sand.u32 %s25, 1
          %s371 = scalar_lea.sflag [#allocation7], %s370
          %s372 = sand.u32 %s101, 1
          %s373 = smul.addr %s372, 8
          %s374 = scalar_lea.vmem [#allocation8], %s373
          %376 = vsyncadd %s371, 0
          %s377 = smul.addr %s32, 8
          %s378 = scalar_lea.hbm %s2, %s377
          %s380 = sshll.u32 %s378, 4
          %s381 = int_to_ptr.hbm [resolvable:$true] %s380
          %s382 = sshll.u32 %s374, 4
          %s383 = int_to_ptr.vmem [resolvable:$true] %s382
          %385 = dma.hbm_to_vmem [thread:$0]  %s381, 128, %s383, %s371
        $region48: #{tpu_custom_call.1} parent=35 // pred_fallthru
          _
      $region36: #{tpu_custom_call.1} parent=5 // pred_fallthru
        _
      %p386 = scmp.le.s32.totalorder 1, %s25
      %p387 = scmp.lt.s32.totalorder %s25, 3
      %p388 = pnand %p386, %p387
      %p389 = pneg %p388
      // Predicated region
      $region49: #{tpu_custom_call.1} parent=5 // pred_check
        _
      $region50: #{tpu_custom_call.1} parent=5 // pred_check_branch
        %391 = sbr.rel (%p388) target = $region52
      $region51: #{tpu_custom_call.1} parent=5 // pred_region
        %s392 = ssub.s32 %s25, 1
        %s393 = sand.u32 %s52, 1
        %s394 = scalar_lea.sflag [#allocation4], %s393
        %s395 = sand.u32 %s52, 1
        %s396 = smul.addr %s395, 8
        %s397 = scalar_lea.vmem [#allocation3], %s396
        // Predicated region
        $region53: #{tpu_custom_call.1} parent=51 // pred_check
          %p398 = pneg %p65
        $region54: #{tpu_custom_call.1} parent=51 // pred_check_branch
          %400 = sbr.rel (%p398) target = $region56
        $region55: #{tpu_custom_call.1} parent=51 // pred_region
          %402 = dma.done %s394, 128
        $region56: #{tpu_custom_call.1} parent=51 // pred_fallthru
          _
        %s403 = sand.u32 %s30, 1
        %s404 = scalar_lea.sflag [#allocation7], %s403
        %s405 = sand.u32 %s78, 1
        %s406 = smul.addr %s405, 8
        %s407 = scalar_lea.vmem [#allocation6], %s406
        // Predicated region
        $region57: #{tpu_custom_call.1} parent=51 // pred_check
          %p408 = pneg %p91
        $region58: #{tpu_custom_call.1} parent=51 // pred_check_branch
          %410 = sbr.rel (%p408) target = $region60
        $region59: #{tpu_custom_call.1} parent=51 // pred_region
          %412 = dma.done %s404, 128
        $region60: #{tpu_custom_call.1} parent=51 // pred_fallthru
          _
        %s413 = sand.u32 %s30, 1
        %s414 = scalar_lea.sflag [#allocation7], %s413
        %s415 = sand.u32 %s104, 1
        %s416 = smul.addr %s415, 8
        %s417 = scalar_lea.vmem [#allocation8], %s416
        // Predicated region
        $region61: #{tpu_custom_call.1} parent=51 // pred_check
          %p418 = pneg %p117
        $region62: #{tpu_custom_call.1} parent=51 // pred_check_branch
          %420 = sbr.rel (%p418) target = $region64
        $region63: #{tpu_custom_call.1} parent=51 // pred_region
          %422 = dma.done %s414, 128
        $region64: #{tpu_custom_call.1} parent=51 // pred_fallthru
          _
        // Predicated region
        $region65: #{tpu_custom_call.1} parent=51 // pred_check
          %p423 = pneg %p138
        $region66: #{tpu_custom_call.1} parent=51 // pred_check_branch
          %425 = sbr.rel (%p423) target = $region68
        $region67: #{tpu_custom_call.1} parent=51 // pred_region
          %427 = dma.done [#allocation10], 512
        $region68: #{tpu_custom_call.1} parent=51 // pred_fallthru
          _
        // Predicated region
        $region69: #{tpu_custom_call.1} parent=51 // pred_check
          %p428 = pneg %p159
        $region70: #{tpu_custom_call.1} parent=51 // pred_check_branch
          %430 = sbr.rel (%p428) target = $region72
        $region71: #{tpu_custom_call.1} parent=51 // pred_region
          %432 = dma.done [#allocation10], 512
        $region72: #{tpu_custom_call.1} parent=51 // pred_fallthru
          _
        // Predicated region
        $region73: #{tpu_custom_call.1} parent=51 // pred_check
          %p433 = pneg %p180
        $region74: #{tpu_custom_call.1} parent=51 // pred_check_branch
          %435 = sbr.rel (%p433) target = $region76
        $region75: #{tpu_custom_call.1} parent=51 // pred_region
          %437 = dma.done [#allocation13], 512
        $region76: #{tpu_custom_call.1} parent=51 // pred_fallthru
          _
        // Predicated region
        $region77: #{tpu_custom_call.1} parent=51 // pred_check
          %p438 = pneg %p201
        $region78: #{tpu_custom_call.1} parent=51 // pred_check_branch
          %440 = sbr.rel (%p438) target = $region80
        $region79: #{tpu_custom_call.1} parent=51 // pred_region
          %442 = dma.done [#allocation13], 512
        $region80: #{tpu_custom_call.1} parent=51 // pred_fallthru
          _
        %s443 = sand.u32 %s52, 1
        %s444 = scalar_lea.sflag [#allocation4], %s443
        %s445 = sand.u32 %s52, 1
        %s446 = smul.addr %s445, 8
        %s447 = scalar_lea.vmem [#allocation3], %s446
        %p448 = pneg %p65
        %p449 = pneg %p62
        %s450 = sand.u32 %s30, 1
        %s451 = scalar_lea.sflag [#allocation7], %s450
        %s452 = sand.u32 %s78, 1
        %s453 = smul.addr %s452, 8
        %s454 = scalar_lea.vmem [#allocation6], %s453
        %p455 = pneg %p91
        %p456 = pneg %p88
        %s457 = sand.u32 %s30, 1
        %s458 = scalar_lea.sflag [#allocation7], %s457
        %s459 = sand.u32 %s104, 1
        %s460 = smul.addr %s459, 8
        %s461 = scalar_lea.vmem [#allocation8], %s460
        %p462 = pneg %p117
        %p463 = pneg %p114
        %p464 = pneg %p138
        %p465 = pneg %p135
        %p466 = pneg %p159
        %p467 = pneg %p156
        %p468 = pneg %p180
        %p469 = pneg %p177
        %p470 = pneg %p201
        %p471 = pneg %p198
        %p472 = pneg %p222
        %p473 = pneg %p219
        %p474 = pneg %p250
        %p475 = pneg %p247
        %s476 = sand.u32 %s237, 1
        %s477 = scalar_lea.sflag [#allocation5], %s476
        %s478 = sand.u32 %s237, 1
        %s479 = smul.addr %s478, 8
        %s480 = scalar_lea.vmem [#allocation15], %s479
        %v481 = vld [vmem:[%s397] sm:$0xff]
        %v482 = vld [vmem:[#allocation9] sm:$0xff]
        %v483 = vld [vmem:[#allocation9 + $0x8] sm:$0xff]
        %v484 = vld [vmem:[#allocation9 + $0x10] sm:$0xff]
        %v485 = vld [vmem:[#allocation9 + $0x18] sm:$0xff]
        %vm486 = vcmask 261120
        %v488 = vsel %vm486, %v481, 0
        %490 = vmatpush.msra.mxu0 0.0
        %491 = vmatpush.msra.mxu0 0.0
        %492 = vmatpush.msra.mxu0 0.0
        %493 = vmatpush.msra.mxu0 0.0
        %494 = vmatpush.msra.mxu0 0.0
        %495 = vmatpush.msra.mxu0 0.0
        %496 = vmatpush.msra.mxu0 0.0
        %497 = vmatpush.msra.mxu0 0.0
        %498 = vmatpush.msra.mxu0 0.0
        %499 = vmatpush.msra.mxu0 0.0
        %500 = vmatpush.msra.mxu0 0.0
        %501 = vmatpush.msra.mxu0 0.0
        %502 = vmatpush.msra.mxu0 %v485
        %503 = vmatpush.msra.mxu0 %v484
        %504 = vmatpush.msra.mxu0 %v483
        %505 = vmatpush.msra.mxu0 %v482
        %506 = vmatmul.f32.gmra.mxu0 %v488
        %v507 = vpop.f32.mrf.mxu0
        %v508 = vadd.f32 0.0, %v507
        %509 = vdwg.mxu0
        %v510 = vand.u32 2147483647, %v508
        %vm511 = vcmp.ge.f32.partialorder %v510, 0.1
        %v512 = vsel %vm511, %v508, 0.0
        %v513 = vmul.f32 %v512, 0.17677669
        %v514 = vld [vmem:[%s407] sm:$0xff]
        %v515 = vld [vmem:[#allocation11] sm:$0xff]
        %v516 = vld [vmem:[#allocation11 + $0x8] sm:$0xff]
        %v517 = vld [vmem:[#allocation11 + $0x10] sm:$0xff]
        %v518 = vld [vmem:[#allocation11 + $0x18] sm:$0xff]
        %v520 = vsel %vm486, %v514, 0
        %522 = vmatpush.msra.mxu0 0.0
        %523 = vmatpush.msra.mxu0 0.0
        %524 = vmatpush.msra.mxu0 0.0
        %525 = vmatpush.msra.mxu0 0.0
        %526 = vmatpush.msra.mxu0 0.0
        %527 = vmatpush.msra.mxu0 0.0
        %528 = vmatpush.msra.mxu0 0.0
        %529 = vmatpush.msra.mxu0 0.0
        %530 = vmatpush.msra.mxu0 0.0
        %531 = vmatpush.msra.mxu0 0.0
        %532 = vmatpush.msra.mxu0 0.0
        %533 = vmatpush.msra.mxu0 0.0
        %534 = vmatpush.msra.mxu0 %v518
        %535 = vmatpush.msra.mxu0 %v517
        %536 = vmatpush.msra.mxu0 %v516
        %537 = vmatpush.msra.mxu0 %v515
        %538 = vmatmul.f32.gmra.mxu0 %v520
        %v539 = vpop.f32.mrf.mxu0
        %v540 = vadd.f32 0.0, %v539
        %541 = vdwg.mxu0
        %v542 = vand.u32 2147483647, %v540
        %vm543 = vcmp.ge.f32.partialorder %v542, 0.1
        %v544 = vsel %vm543, %v540, 0.0
        %v545 = vld [vmem:[%s417] sm:$0xff]
        %v546 = vld [vmem:[#allocation12] sm:$0xff]
        %v547 = vld [vmem:[#allocation12 + $0x8] sm:$0xff]
        %v548 = vld [vmem:[#allocation12 + $0x10] sm:$0xff]
        %v549 = vld [vmem:[#allocation12 + $0x18] sm:$0xff]
        %v551 = vsel %vm486, %v545, 0
        %553 = vmatpush.msra.mxu0 0.0
        %554 = vmatpush.msra.mxu0 0.0
        %555 = vmatpush.msra.mxu0 0.0
        %556 = vmatpush.msra.mxu0 0.0
        %557 = vmatpush.msra.mxu0 0.0
        %558 = vmatpush.msra.mxu0 0.0
        %559 = vmatpush.msra.mxu0 0.0
        %560 = vmatpush.msra.mxu0 0.0
        %561 = vmatpush.msra.mxu0 0.0
        %562 = vmatpush.msra.mxu0 0.0
        %563 = vmatpush.msra.mxu0 0.0
        %564 = vmatpush.msra.mxu0 0.0
        %565 = vmatpush.msra.mxu0 %v549
        %566 = vmatpush.msra.mxu0 %v548
        %567 = vmatpush.msra.mxu0 %v547
        %568 = vmatpush.msra.mxu0 %v546
        %569 = vmatmul.f32.gmra.mxu0 %v551
        %v570 = vpop.f32.mrf.mxu0
        %v571 = vadd.f32 0.0, %v570
        %572 = vdwg.mxu0
        %v573 = vand.u32 2147483647, %v571
        %vm574 = vcmp.ge.f32.partialorder %v573, 0.1
        %v575 = vsel %vm574, %v571, 0.0
        %vm576 = vcmask 64512
        %v578 = vsel %vm576, %v513, 0
        %v581 = vsel %vm576, %v544, 0
        %583 = vmatpush.xpose.msra.mxu0 0.0
        %584 = vmatpush.xpose.msra.mxu0 0.0
        %585 = vmatpush.xpose.msra.mxu0 0.0
        %586 = vmatpush.xpose.msra.mxu0 0.0
        %587 = vmatpush.xpose.msra.mxu0 0.0
        %588 = vmatpush.xpose.msra.mxu0 0.0
        %589 = vmatpush.xpose.msra.mxu0 0.0
        %590 = vmatpush.xpose.msra.mxu0 0.0
        %591 = vmatpush.xpose.msra.mxu0 0.0
        %592 = vmatpush.xpose.msra.mxu0 0.0
        %593 = vmatpush.xpose.msra.mxu0 0.0
        %594 = vmatpush.xpose.msra.mxu0 0.0
        %595 = vmatpush.xpose.msra.mxu0 0.0
        %596 = vmatpush.xpose.msra.mxu0 0.0
        %597 = vmatpush.xpose.msra.mxu0 0.0
        %598 = vmatpush.xpose.msra.mxu0 %v581
        %599 = vmatmul.f32.gmra.mxu0 %v578
        %v600 = vpop.f32.mrf.mxu0
        %v601 = vadd.f32 0.0, %v600
        %602 = vdwg.mxu0
        %v603 = vsel %vm576, %v601, -inf
        %604 = vmax.xlane.f32.xlu0 %v603
        %v605 = vpop.xlane.xlu0 %604
        %v606 = vsub.f32 %v601, %v605
        %v607 = vmul.f32 %v606, 1.442695
        %v608 = vpow.pop %v607
        %v609 = vsel %vm576, %v608, 0.0
        %610 = vadd.xlane.f32.xlu0 %v609
        %v611 = vpop.xlane.xlu0 %610
        %v613 = vsel %vm576, %v608, 0
        %615 = vmatpush.msra.mxu0 0.0
        %616 = vmatpush.msra.mxu0 0.0
        %617 = vmatpush.msra.mxu0 0.0
        %618 = vmatpush.msra.mxu0 0.0
        %619 = vmatpush.msra.mxu0 0.0
        %620 = vmatpush.msra.mxu0 0.0
        %621 = vmatpush.msra.mxu0 0.0
        %622 = vmatpush.msra.mxu0 0.0
        %623 = vmatpush.msra.mxu0 0.0
        %624 = vmatpush.msra.mxu0 0.0
        %625 = vmatpush.msra.mxu0 0.0
        %626 = vmatpush.msra.mxu0 0.0
        %627 = vmatpush.msra.mxu0 0.0
        %628 = vmatpush.msra.mxu0 0.0
        %629 = vmatpush.msra.mxu0 0.0
        %630 = vmatpush.msra.mxu0 %v575
        %631 = vmatmul.f32.gmra.mxu0 %v613
        %v632 = vpop.f32.mrf.mxu0
        %v633 = vadd.f32 0.0, %v632
        %634 = vdwg.mxu0
        %v635 = vrcp.pop %v611
        %v636 = vmul.f32 %v633, %v635
        %637 = vst.msk [vmem:[#allocation2] sm:$0xff] %vm576, %v636
        %638 = vrot.lane.b32.xlu0 %v513, 120
        %v639 = vpop.permute.xlu0 %638
        %640 = vrot.lane.b32.xlu0 %v544, 120
        %v641 = vpop.permute.xlu0 %640
        %v642 = vsel %vm576, %v639, 0
        %v644 = vsel %vm576, %v641, 0
        %646 = vmatpush.xpose.msra.mxu0 0.0
        %647 = vmatpush.xpose.msra.mxu0 0.0
        %648 = vmatpush.xpose.msra.mxu0 0.0
        %649 = vmatpush.xpose.msra.mxu0 0.0
        %650 = vmatpush.xpose.msra.mxu0 0.0
        %651 = vmatpush.xpose.msra.mxu0 0.0
        %652 = vmatpush.xpose.msra.mxu0 0.0
        %653 = vmatpush.xpose.msra.mxu0 0.0
        %654 = vmatpush.xpose.msra.mxu0 0.0
        %655 = vmatpush.xpose.msra.mxu0 0.0
        %656 = vmatpush.xpose.msra.mxu0 0.0
        %657 = vmatpush.xpose.msra.mxu0 0.0
        %658 = vmatpush.xpose.msra.mxu0 0.0
        %659 = vmatpush.xpose.msra.mxu0 0.0
        %660 = vmatpush.xpose.msra.mxu0 0.0
        %661 = vmatpush.xpose.msra.mxu0 %v644
        %662 = vmatmul.f32.gmra.mxu0 %v642
        %v663 = vpop.f32.mrf.mxu0
        %v664 = vadd.f32 0.0, %v663
        %665 = vdwg.mxu0
        %v666 = vsel %vm576, %v664, -inf
        %667 = vmax.xlane.f32.xlu0 %v666
        %v668 = vpop.xlane.xlu0 %667
        %v669 = vsub.f32 %v664, %v668
        %v670 = vmul.f32 %v669, 1.442695
        %v671 = vpow.pop %v670
        %v672 = vsel %vm576, %v671, 0.0
        %673 = vadd.xlane.f32.xlu0 %v672
        %v674 = vpop.xlane.xlu0 %673
        %676 = vrot.lane.b32.xlu0 %v575, 120
        %v677 = vpop.permute.xlu0 %676
        %v680 = vsel %vm576, %v671, 0
        %682 = vmatpush.msra.mxu0 0.0
        %683 = vmatpush.msra.mxu0 0.0
        %684 = vmatpush.msra.mxu0 0.0
        %685 = vmatpush.msra.mxu0 0.0
        %686 = vmatpush.msra.mxu0 0.0
        %687 = vmatpush.msra.mxu0 0.0
        %688 = vmatpush.msra.mxu0 0.0
        %689 = vmatpush.msra.mxu0 0.0
        %690 = vmatpush.msra.mxu0 0.0
        %691 = vmatpush.msra.mxu0 0.0
        %692 = vmatpush.msra.mxu0 0.0
        %693 = vmatpush.msra.mxu0 0.0
        %694 = vmatpush.msra.mxu0 0.0
        %695 = vmatpush.msra.mxu0 0.0
        %696 = vmatpush.msra.mxu0 0.0
        %697 = vmatpush.msra.mxu0 %v677
        %698 = vmatmul.f32.gmra.mxu0 %v680
        %v699 = vpop.f32.mrf.mxu0
        %v700 = vadd.f32 0.0, %v699
        %701 = vdwg.mxu0
        %v702 = vrcp.pop %v674
        %v703 = vmul.f32 %v700, %v702
        %705 = vrot.lane.b32.xlu0 %v703, 8
        %v706 = vpop.permute.xlu0 %705
        %vm708 = vcmask 130112
        %709 = vst.msk [vmem:[#allocation2] sm:$0xff] %vm708, %v706
        %710 = vrot.lane.b32.xlu0 %v513, 112
        %v711 = vpop.permute.xlu0 %710
        %712 = vrot.lane.b32.xlu0 %v544, 112
        %v713 = vpop.permute.xlu0 %712
        %v714 = vsel %vm576, %v711, 0
        %v716 = vsel %vm576, %v713, 0
        %718 = vmatpush.xpose.msra.mxu0 0.0
        %719 = vmatpush.xpose.msra.mxu0 0.0
        %720 = vmatpush.xpose.msra.mxu0 0.0
        %721 = vmatpush.xpose.msra.mxu0 0.0
        %722 = vmatpush.xpose.msra.mxu0 0.0
        %723 = vmatpush.xpose.msra.mxu0 0.0
        %724 = vmatpush.xpose.msra.mxu0 0.0
        %725 = vmatpush.xpose.msra.mxu0 0.0
        %726 = vmatpush.xpose.msra.mxu0 0.0
        %727 = vmatpush.xpose.msra.mxu0 0.0
        %728 = vmatpush.xpose.msra.mxu0 0.0
        %729 = vmatpush.xpose.msra.mxu0 0.0
        %730 = vmatpush.xpose.msra.mxu0 0.0
        %731 = vmatpush.xpose.msra.mxu0 0.0
        %732 = vmatpush.xpose.msra.mxu0 0.0
        %733 = vmatpush.xpose.msra.mxu0 %v716
        %734 = vmatmul.f32.gmra.mxu0 %v714
        %v735 = vpop.f32.mrf.mxu0
        %v736 = vadd.f32 0.0, %v735
        %737 = vdwg.mxu0
        %v738 = vsel %vm576, %v736, -inf
        %739 = vmax.xlane.f32.xlu0 %v738
        %v740 = vpop.xlane.xlu0 %739
        %v741 = vsub.f32 %v736, %v740
        %v742 = vmul.f32 %v741, 1.442695
        %v743 = vpow.pop %v742
        %v744 = vsel %vm576, %v743, 0.0
        %745 = vadd.xlane.f32.xlu0 %v744
        %v746 = vpop.xlane.xlu0 %745
        %747 = vrot.lane.b32.xlu0 %v575, 112
        %v748 = vpop.permute.xlu0 %747
        %v751 = vsel %vm576, %v743, 0
        %753 = vmatpush.msra.mxu0 0.0
        %754 = vmatpush.msra.mxu0 0.0
        %755 = vmatpush.msra.mxu0 0.0
        %756 = vmatpush.msra.mxu0 0.0
        %757 = vmatpush.msra.mxu0 0.0
        %758 = vmatpush.msra.mxu0 0.0
        %759 = vmatpush.msra.mxu0 0.0
        %760 = vmatpush.msra.mxu0 0.0
        %761 = vmatpush.msra.mxu0 0.0
        %762 = vmatpush.msra.mxu0 0.0
        %763 = vmatpush.msra.mxu0 0.0
        %764 = vmatpush.msra.mxu0 0.0
        %765 = vmatpush.msra.mxu0 0.0
        %766 = vmatpush.msra.mxu0 0.0
        %767 = vmatpush.msra.mxu0 0.0
        %768 = vmatpush.msra.mxu0 %v748
        %769 = vmatmul.f32.gmra.mxu0 %v751
        %v770 = vpop.f32.mrf.mxu0
        %v771 = vadd.f32 0.0, %v770
        %772 = vdwg.mxu0
        %v773 = vrcp.pop %v746
        %v774 = vmul.f32 %v771, %v773
        %776 = vrot.lane.b32.xlu0 %v774, 16
        %v777 = vpop.permute.xlu0 %776
        %vm779 = vcmask 195712
        %780 = vst.msk [vmem:[#allocation2] sm:$0xff] %vm779, %v777
        %781 = vrot.lane.b32.xlu0 %v513, 104
        %v782 = vpop.permute.xlu0 %781
        %783 = vrot.lane.b32.xlu0 %v544, 104
        %v784 = vpop.permute.xlu0 %783
        %v785 = vsel %vm576, %v782, 0
        %v787 = vsel %vm576, %v784, 0
        %789 = vmatpush.xpose.msra.mxu0 0.0
        %790 = vmatpush.xpose.msra.mxu0 0.0
        %791 = vmatpush.xpose.msra.mxu0 0.0
        %792 = vmatpush.xpose.msra.mxu0 0.0
        %793 = vmatpush.xpose.msra.mxu0 0.0
        %794 = vmatpush.xpose.msra.mxu0 0.0
        %795 = vmatpush.xpose.msra.mxu0 0.0
        %796 = vmatpush.xpose.msra.mxu0 0.0
        %797 = vmatpush.xpose.msra.mxu0 0.0
        %798 = vmatpush.xpose.msra.mxu0 0.0
        %799 = vmatpush.xpose.msra.mxu0 0.0
        %800 = vmatpush.xpose.msra.mxu0 0.0
        %801 = vmatpush.xpose.msra.mxu0 0.0
        %802 = vmatpush.xpose.msra.mxu0 0.0
        %803 = vmatpush.xpose.msra.mxu0 0.0
        %804 = vmatpush.xpose.msra.mxu0 %v787
        %805 = vmatmul.f32.gmra.mxu0 %v785
        %v806 = vpop.f32.mrf.mxu0
        %v807 = vadd.f32 0.0, %v806
        %808 = vdwg.mxu0
        %v809 = vsel %vm576, %v807, -inf
        %810 = vmax.xlane.f32.xlu0 %v809
        %v811 = vpop.xlane.xlu0 %810
        %v812 = vsub.f32 %v807, %v811
        %v813 = vmul.f32 %v812, 1.442695
        %v814 = vpow.pop %v813
        %v815 = vsel %vm576, %v814, 0.0
        %816 = vadd.xlane.f32.xlu0 %v815
        %v817 = vpop.xlane.xlu0 %816
        %818 = vrot.lane.b32.xlu0 %v575, 104
        %v819 = vpop.permute.xlu0 %818
        %v822 = vsel %vm576, %v814, 0
        %824 = vmatpush.msra.mxu0 0.0
        %825 = vmatpush.msra.mxu0 0.0
        %826 = vmatpush.msra.mxu0 0.0
        %827 = vmatpush.msra.mxu0 0.0
        %828 = vmatpush.msra.mxu0 0.0
        %829 = vmatpush.msra.mxu0 0.0
        %830 = vmatpush.msra.mxu0 0.0
        %831 = vmatpush.msra.mxu0 0.0
        %832 = vmatpush.msra.mxu0 0.0
        %833 = vmatpush.msra.mxu0 0.0
        %834 = vmatpush.msra.mxu0 0.0
        %835 = vmatpush.msra.mxu0 0.0
        %836 = vmatpush.msra.mxu0 0.0
        %837 = vmatpush.msra.mxu0 0.0
        %838 = vmatpush.msra.mxu0 0.0
        %839 = vmatpush.msra.mxu0 %v819
        %840 = vmatmul.f32.gmra.mxu0 %v822
        %v841 = vpop.f32.mrf.mxu0
        %v842 = vadd.f32 0.0, %v841
        %843 = vdwg.mxu0
        %v844 = vrcp.pop %v817
        %v845 = vmul.f32 %v842, %v844
        %847 = vrot.lane.b32.xlu0 %v845, 24
        %v848 = vpop.permute.xlu0 %847
        %vm850 = vcmask 261312
        %851 = vst.msk [vmem:[#allocation2] sm:$0xff] %vm850, %v848
        %v852 = vld [vmem:[#allocation2] sm:$0xff]
        %v853 = vld [vmem:[#allocation14] sm:$0xff]
        %v854 = vld [vmem:[#allocation14 + $0x8] sm:$0xff]
        %v855 = vld [vmem:[#allocation14 + $0x10] sm:$0xff]
        %v856 = vld [vmem:[#allocation14 + $0x18] sm:$0xff]
        %v857 = vld [vmem:[%s7] sm:$0x1]
        %v859 = vperm.slane %v857, 0
        %v862 = vsel %vm486, %v852, 0
        %864 = vmatpush.msra.mxu0 0.0
        %865 = vmatpush.msra.mxu0 0.0
        %866 = vmatpush.msra.mxu0 0.0
        %867 = vmatpush.msra.mxu0 0.0
        %868 = vmatpush.msra.mxu0 0.0
        %869 = vmatpush.msra.mxu0 0.0
        %870 = vmatpush.msra.mxu0 0.0
        %871 = vmatpush.msra.mxu0 0.0
        %872 = vmatpush.msra.mxu0 0.0
        %873 = vmatpush.msra.mxu0 0.0
        %874 = vmatpush.msra.mxu0 0.0
        %875 = vmatpush.msra.mxu0 0.0
        %876 = vmatpush.msra.mxu0 %v856
        %877 = vmatpush.msra.mxu0 %v855
        %878 = vmatpush.msra.mxu0 %v854
        %879 = vmatpush.msra.mxu0 %v853
        %880 = vmatmul.f32.gmra.mxu0 %v862
        %v881 = vpop.f32.mrf.mxu0
        %v882 = vadd.f32 %v859, %v881
        %883 = vdwg.mxu0
        %884 = vst.msk [vmem:[%s480] sm:$0xff] %vm486, %v882
        %s885 = sand.u32 %s237, 1
        %s886 = scalar_lea.sflag [#allocation5], %s885
        %s887 = sand.u32 %s237, 1
        %s888 = smul.addr %s887, 8
        %s889 = scalar_lea.vmem [#allocation15], %s888
        // Predicated region
        $region81: #{tpu_custom_call.1} parent=51 // pred_check
          %p890 = pneg %p247
        $region82: #{tpu_custom_call.1} parent=51 // pred_check_branch
          %892 = sbr.rel (%p890) target = $region84
        $region83: #{tpu_custom_call.1} parent=51 // pred_region
          %894 = vsyncadd %s886, 0
          %s895 = sadd.s32 %s35, %s34
          %s896 = smul.addr %s895, 8
          %s897 = scalar_lea.hbm %s8, %s896
          %s899 = sshll.u32 %s889, 4
          %s900 = int_to_ptr.vmem [resolvable:$true] %s899
          %s901 = sshll.u32 %s897, 4
          %s902 = int_to_ptr.hbm [resolvable:$true] %s901
          %904 = dma.vmem_to_hbm [thread:$0]  %s900, 128, %s902, %s886
        $region84: #{tpu_custom_call.1} parent=51 // pred_fallthru
          _
      $region52: #{tpu_custom_call.1} parent=5 // pred_fallthru
        _
      %p905 = scmp.le.s32.totalorder 2, %s25
      // Predicated region
      $region85: #{tpu_custom_call.1} parent=5 // pred_check
        %p906 = pneg %p905
      $region86: #{tpu_custom_call.1} parent=5 // pred_check_branch
        %908 = sbr.rel (%p906) target = $region88
      $region87: #{tpu_custom_call.1} parent=5 // pred_region
        %s909 = ssub.s32 %s25, 2
        // Predicated region
        $region89: #{tpu_custom_call.1} parent=87 // pred_check
          %p910 = pneg %p253
        $region90: #{tpu_custom_call.1} parent=87 // pred_check_branch
          %912 = sbr.rel (%p910) target = $region92
        $region91: #{tpu_custom_call.1} parent=87 // pred_region
          %s913 = sand.u32 %s238, 1
          %s914 = scalar_lea.sflag [#allocation5], %s913
          %s915 = sand.u32 %s238, 1
          %s916 = smul.addr %s915, 8
          %s917 = scalar_lea.vmem [#allocation15], %s916
          %919 = dma.done %s914, 128
        $region92: #{tpu_custom_call.1} parent=87 // pred_fallthru
          _
      $region88: #{tpu_custom_call.1} parent=5 // pred_fallthru
        _
    $region6: #{tpu_custom_call.1} parent=1 // loop_footer
      %s29 = sadd.s32 1, %s25
    $region7: #{tpu_custom_call.1} parent=1 // loop_footer_branch
      %24 = sbr.rel target = $region3
    $region8: #{tpu_custom_call.1} parent=1 // loop_exit
      _
    %920 = vsyncpa [#allocation4], 1
    %s921 = scalar_lea.sflag [#allocation4], 1
    %922 = vsyncpa %s921, 1
    %923 = vsyncpa [#allocation7], 1
    %s924 = scalar_lea.sflag [#allocation7], 1
    %925 = vsyncpa %s924, 1
    %926 = vsyncpa [#allocation10], 1
    %927 = vsyncpa [#allocation13], 1
    %928 = vsyncpa [#allocation5], 1
    %s929 = scalar_lea.sflag [#allocation5], 1
    %930 = vsyncpa %s929, 1

</llo_original>
